<compile_context>
chip_gen: v6e
topology: v6e:2x2x1
jax: 0.10.0
libtpu: 0.0.40
codegen_flags: <defaults>
</compile_context>

<pallas_src>
import jax
import jax.numpy as jnp
from jax.experimental import pallas as pl
from jax.experimental.pallas import tpu as pltpu


def _round_up(x, m):
    return ((x + m - 1) // m) * m


def _block_diag(w, a):
    """Block-diagonal replication: w (K, N) -> (a*K, a*N) with w on the diagonal blocks."""
    k, n = w.shape
    out = jnp.zeros((a * k, a * n), w.dtype)
    for i in range(a):
        out = out.at[i * k:(i + 1) * k, i * n:(i + 1) * n].set(w)
    return out


def critic_gnn_kernel(obs_ref,
                      w_obs_ref, b_enc_ref,
                      w_gnn_ref, b_gnn_ref,
                      w1x_ref, b1_ref,
                      w2_ref, b2_ref,
                      w3_ref, b3_ref,
                      q_ref):
    cdt = obs_ref.dtype                    # MXU operand dtype (bf16 or f32); accumulation f32
    a_hg = b_enc_ref.shape[-1]             # A * hidden_dim_gnn (== 128 in default config)

    obs = obs_ref[...]                                                   # (TN, A*D)

    # obs feeds both the encoder and the obs half of fc1: one fused matmul, output
    # sliced at the whole-vreg lane boundary a_hg (no lane relayout).
    r = jnp.dot(obs, w_obs_ref[...], preferred_element_type=jnp.float32)  # (TN, A*Hg + A*H)
    h = jnp.maximum(r[:, :a_hg] + b_enc_ref[...], 0.0).astype(cdt)        # (TN, A*Hg)
    z1_obs = r[:, a_hg:]                                                  # (TN, A*H) f32

    # GNN second stage: w_gnn = blockdiag(w_self) + tile(w_nbr)/A, so a single
    # (A*Hg, A*Hg) matmul performs the self transform AND the per-group agent mean.
    x = jnp.maximum(jnp.dot(h, w_gnn_ref[...], preferred_element_type=jnp.float32)
                    + b_gnn_ref[...], 0.0).astype(cdt)                    # (TN, A*Hg)

    # Critic head (biases folded into the relu expressions; no extra temporaries).
    z1 = jnp.maximum(jnp.dot(x, w1x_ref[...], preferred_element_type=jnp.float32)
                     + z1_obs + b1_ref[...], 0.0).astype(cdt)             # (TN, A*H)
    z2 = jnp.maximum(jnp.dot(z1, w2_ref[...], preferred_element_type=jnp.float32)
                     + b2_ref[...], 0.0).astype(cdt)                      # (TN, A*H)
    q = jnp.dot(z2, w3_ref[...], preferred_element_type=jnp.float32) + b3_ref[...]
    q_ref[...] = q.astype(q_ref.dtype)                                    # (TN, A)


def critic_gnn_forward(obs, params, *, tile_n=2048, compute_dtype=jnp.bfloat16):
    """obs: (N, A, D_obs).  Returns q: (N, A, 1) float32."""
    N, A, D = obs.shape
    Hg = params["w_enc"].shape[1]
    H = params["w2"].shape[0]
    f32 = jnp.float32
    cdt = compute_dtype

    # ---- tile selection ------------------------------------------------------
    align = 16                                  # sublane tile (bf16 packing; also /8 for f32)
    n_al = _round_up(max(N, 1), align)
    tn = min(_round_up(int(tile_n), align), n_al)
    # v7x megacore: if the whole problem fits in one tile but is big enough, split into
    # two grid steps so both TensorCores get work.
    if tn == n_al and n_al > 256:
        tn = _round_up((n_al + 1) // 2, align)
    n_pad = _round_up(N, tn)
    grid = (n_pad // tn,)

    # obs consumed in native (N, A, D) layout; flatten to (N, A*D) is a free reshape.
    obs2 = obs.reshape(N, A * D).astype(cdt)
    if n_pad != N:
        obs2 = jnp.pad(obs2, ((0, n_pad - N), (0, 0)))

    p = {k: v.astype(f32) for k, v in params.items()}

    # ---- host-side block-diagonal / folded weights (agent axis -> lanes) -----
    w_enc_bd = _block_diag(p["w_enc"], A)                        # (A*D,  A*Hg)
    w1_obs_bd = _block_diag(p["w1"][Hg:, :], A)                  # (A*D,  A*H)
    w_obs_fused = jnp.concatenate([w_enc_bd, w1_obs_bd], axis=1)  # (A*D, A*Hg + A*H)
    w_gnn = _block_diag(p["w_self"], A) + jnp.tile(p["w_nbr"], (A, A)) / A   # (A*Hg, A*Hg)
    w1x_bd = _block_diag(p["w1"][:Hg, :], A)                     # (A*Hg, A*H)
    w2_bd = _block_diag(p["w2"], A)                              # (A*H,  A*H)
    w3_bd = jnp.zeros((A * H, A), f32)
    for i in range(A):
        w3_bd = w3_bd.at[i * H:(i + 1) * H, i].set(p["w3"][:, 0])  # (A*H, A)

    b_enc = jnp.tile(p["b_enc"], (1, A))                         # (1, A*Hg)
    b_gnn = jnp.tile(p["b_gnn"], (1, A))
    b1 = jnp.tile(p["b1"], (1, A))                               # (1, A*H)
    b2 = jnp.tile(p["b2"], (1, A))
    b3 = jnp.tile(p["b3"], (1, A))                               # (1, A)

    weight_args = [
        w_obs_fused.astype(cdt), b_enc,
        w_gnn.astype(cdt), b_gnn,
        w1x_bd.astype(cdt), b1,
        w2_bd.astype(cdt), b2,
        w3_bd.astype(cdt), b3,
    ]

    def whole(shape):
        return pl.BlockSpec(shape, lambda i, _nd=len(shape): (0,) * _nd)

    in_specs = [pl.BlockSpec((tn, A * D), lambda i: (i, 0))]
    in_specs += [whole(w.shape) for w in weight_args]
    out_spec = pl.BlockSpec((tn, A), lambda i: (i, 0))

    # ---- VMEM budget & cost estimate ------------------------------------------------
    isz = jnp.dtype(cdt).itemsize
    w_bytes = sum(int(w.size) * w.dtype.itemsize for w in weight_args)
    est_vmem = (2 * tn * A * D * isz              # double-buffered obs block
                + 2 * tn * A * 4                  # double-buffered output block
                + 6 * tn * A * max(Hg, H) * 4     # live f32 intermediates
                + w_bytes)
    vmem_limit = int(min(64 * 1024 * 1024, max(16 * 1024 * 1024, 2 * est_vmem)))

    ad, ahg, ah = A * D, A * Hg, A * H
    flops = 2 * N * (ad * (ahg + ah) + ahg * ahg + ahg * ah + ah * ah + ah * A)
    bytes_accessed = int(obs2.size) * isz + n_pad * A * 4 + w_bytes
    cost = pl.CostEstimate(flops=int(flops), transcendentals=0,
                           bytes_accessed=int(bytes_accessed))

    q = pl.pallas_call(
        critic_gnn_kernel,
        out_shape=jax.ShapeDtypeStruct((n_pad, A), jnp.float32),
        grid_spec=pltpu.PrefetchScalarGridSpec(
            num_scalar_prefetch=0,
            grid=grid,
            in_specs=in_specs,
            out_specs=out_spec,
        ),
        compiler_params=pltpu.CompilerParams(
            dimension_semantics=("parallel",),       # N axis shardable across v7x cores
            vmem_limit_bytes=vmem_limit),
        cost_estimate=cost,
    )(obs2, *weight_args)

    return q[:N, :, None]                            # (N, A, 1)


def init_params(key, d_obs, hg, h):
    ks = jax.random.split(key, 6)
    s = 0.1
    return {
        "w_enc":  s * jax.random.normal(ks[0], (d_obs, hg), jnp.float32),
        "b_enc":  jnp.zeros((1, hg), jnp.float32),
        "w_self": s * jax.random.normal(ks[1], (hg, hg), jnp.float32),
        "w_nbr":  s * jax.random.normal(ks[2], (hg, hg), jnp.float32),
        "b_gnn":  jnp.zeros((1, hg), jnp.float32),
        # fc1 weight exactly as in the PyTorch module: (hidden_dim_gnn + obs_dim, hidden_dim)
        "w1":     s * jax.random.normal(ks[3], (hg + d_obs, h), jnp.float32),
        "b1":     jnp.full((1, h), 0.01, jnp.float32),
        "w2":     s * jax.random.normal(ks[4], (h, h), jnp.float32),
        "b2":     jnp.full((1, h), 0.01, jnp.float32),
        "w3":     s * jax.random.normal(ks[5], (h, 1), jnp.float32),
        "b3":     jnp.full((1, 1), 0.01, jnp.float32),
    }


def reference_forward(obs, p):
    h = jax.nn.relu(obs @ p["w_enc"] + p["b_enc"])
    agg = jnp.mean(h, axis=1, keepdims=True)
    x = jax.nn.relu(h @ p["w_self"] + agg @ p["w_nbr"] + p["b_gnn"])
    cat = jnp.concatenate([x, obs], axis=-1)
    z1 = jax.nn.relu(cat @ p["w1"] + p["b1"])
    z2 = jax.nn.relu(z1 @ p["w2"] + p["b2"])
    return z2 @ p["w3"] + p["b3"]


if __name__ == "__main__":
    # Small, module-consistent shapes:
    #   batch=2, max_seq_len=4, n_agents=4, obs_dim=16, hidden_dim_gnn=32, hidden_dim=32
    bs, max_t, n_agents, obs_dim = 2, 4, 4, 16
    hidden_dim_gnn, hidden_dim = 32, 32

    key = jax.random.PRNGKey(0)
    k_obs, k_par = jax.random.split(key)

    obs_btad = jax.random.normal(k_obs, (bs, max_t, n_agents, obs_dim), jnp.float32)
    obs = obs_btad.reshape(bs * max_t, n_agents, obs_dim)
    params = init_params(k_par, obs_dim, hidden_dim_gnn, hidden_dim)

    q_ref = reference_forward(obs, params)

    # f32-operand run (tight tolerance)
    q32 = jax.block_until_ready(
        critic_gnn_forward(obs, params, compute_dtype=jnp.float32))
    assert q32.shape == (bs * max_t, n_agents, 1)
    assert jnp.allclose(q32, q_ref, atol=1e-3, rtol=1e-3), "f32 mismatch vs reference"

    # default bf16-operand run (MXU fast path, f32 accumulation) — looser tolerance
    q = jax.block_until_ready(critic_gnn_forward(obs, params))
    assert q.shape == (bs * max_t, n_agents, 1)
    assert jnp.allclose(q, q_ref, atol=5e-2, rtol=5e-2), "bf16 mismatch vs reference"

    # ragged group count (exercises the N-tile padding path)
    q_r = jax.block_until_ready(
        critic_gnn_forward(obs[:6], params, compute_dtype=jnp.float32))
    assert q_r.shape == (6, n_agents, 1)
    assert jnp.allclose(q_r, q_ref[:6], atol=1e-3, rtol=1e-3), "padded-tile mismatch"

    # reshape back to (bs, max_t, n_agents, 1) — same as the PyTorch critic output
    _ = q.reshape(bs, max_t, n_agents, 1)
    print("KERNEL_OK")
</pallas_src>

<mosaic_0001>
module attributes {stable_mosaic.version = 11 : i64} {
  func.func @critic_gnn_kernel(%arg0: i32, %arg1: memref<16x64xf32, #tpu.memory_space<vmem>>, %arg2: memref<64x256xf32, #tpu.memory_space<vmem>>, %arg3: memref<1x128xf32, #tpu.memory_space<vmem>>, %arg4: memref<128x128xf32, #tpu.memory_space<vmem>>, %arg5: memref<1x128xf32, #tpu.memory_space<vmem>>, %arg6: memref<128x128xf32, #tpu.memory_space<vmem>>, %arg7: memref<1x128xf32, #tpu.memory_space<vmem>>, %arg8: memref<128x128xf32, #tpu.memory_space<vmem>>, %arg9: memref<1x128xf32, #tpu.memory_space<vmem>>, %arg10: memref<128x4xf32, #tpu.memory_space<vmem>>, %arg11: memref<1x4xf32, #tpu.memory_space<vmem>>, %arg12: memref<16x4xf32, #tpu.memory_space<vmem>>) attributes {dimension_semantics = [#tpu.dimension_semantics<parallel>], iteration_bounds = array<i64: 1>, scalar_prefetch = 0 : i64, scratch_operands = 0 : i64, tpu.core_type = #tpu.core_type<tc>, window_params = [{transform_indices = @transform_0, window_bounds = array<i64: 16, 64>}, {pipeline_mode = #tpu.pipeline_mode<synchronous>, transform_indices = @transform_1, window_bounds = array<i64: 64, 256>}, {pipeline_mode = #tpu.pipeline_mode<synchronous>, transform_indices = @transform_2, window_bounds = array<i64: 1, 128>}, {pipeline_mode = #tpu.pipeline_mode<synchronous>, transform_indices = @transform_3, window_bounds = array<i64: 128, 128>}, {pipeline_mode = #tpu.pipeline_mode<synchronous>, transform_indices = @transform_4, window_bounds = array<i64: 1, 128>}, {pipeline_mode = #tpu.pipeline_mode<synchronous>, transform_indices = @transform_5, window_bounds = array<i64: 128, 128>}, {pipeline_mode = #tpu.pipeline_mode<synchronous>, transform_indices = @transform_6, window_bounds = array<i64: 1, 128>}, {pipeline_mode = #tpu.pipeline_mode<synchronous>, transform_indices = @transform_7, window_bounds = array<i64: 128, 128>}, {pipeline_mode = #tpu.pipeline_mode<synchronous>, transform_indices = @transform_8, window_bounds = array<i64: 1, 128>}, {pipeline_mode = #tpu.pipeline_mode<synchronous>, transform_indices = @transform_9, window_bounds = array<i64: 128, 4>}, {pipeline_mode = #tpu.pipeline_mode<synchronous>, transform_indices = @transform_10, window_bounds = array<i64: 1, 4>}, {transform_indices = @transform_11, window_bounds = array<i64: 16, 4>}]} {
    %c0 = arith.constant 0 : index
    %c0_0 = arith.constant 0 : index
    %0 = vector.load %arg1[%c0, %c0_0] : memref<16x64xf32, #tpu.memory_space<vmem>>, vector<16x64xf32>
    %c0_1 = arith.constant 0 : index
    %c0_2 = arith.constant 0 : index
    %1 = vector.load %arg2[%c0_1, %c0_2] : memref<64x256xf32, #tpu.memory_space<vmem>>, vector<64x256xf32>
    %cst = arith.constant dense<0.000000e+00> : vector<16x256xf32>
    %2 = tpu.matmul %0, %1, %cst {dimension_numbers = #tpu.dot_dimension_numbers<[1], [0], [0], [1], [0, 0, 1, 1], [], []>} : vector<16x64xf32>, vector<64x256xf32>, vector<16x256xf32> -> vector<16x256xf32>
    %3 = vector.extract_strided_slice %2 {offsets = [0, 0], sizes = [16, 128], strides = [1, 1]} : vector<16x256xf32> to vector<16x128xf32>
    %c0_3 = arith.constant 0 : index
    %c0_4 = arith.constant 0 : index
    %4 = vector.load %arg3[%c0_3, %c0_4] : memref<1x128xf32, #tpu.memory_space<vmem>>, vector<1x128xf32>
    %5 = vector.broadcast %4 : vector<1x128xf32> to vector<16x128xf32>
    %6 = arith.addf %3, %5 : vector<16x128xf32>
    %cst_5 = arith.constant 0.000000e+00 : f32
    %7 = vector.broadcast %cst_5 : f32 to vector<16x128xf32>
    %8 = arith.maximumf %6, %7 : vector<16x128xf32>
    %9 = vector.extract_strided_slice %2 {offsets = [0, 128], sizes = [16, 128], strides = [1, 1]} : vector<16x256xf32> to vector<16x128xf32>
    %c0_6 = arith.constant 0 : index
    %c0_7 = arith.constant 0 : index
    %10 = vector.load %arg4[%c0_6, %c0_7] : memref<128x128xf32, #tpu.memory_space<vmem>>, vector<128x128xf32>
    %cst_8 = arith.constant dense<0.000000e+00> : vector<16x128xf32>
    %11 = tpu.matmul %8, %10, %cst_8 {dimension_numbers = #tpu.dot_dimension_numbers<[1], [0], [0], [1], [0, 0, 1, 1], [], []>} : vector<16x128xf32>, vector<128x128xf32>, vector<16x128xf32> -> vector<16x128xf32>
    %c0_9 = arith.constant 0 : index
    %c0_10 = arith.constant 0 : index
    %12 = vector.load %arg5[%c0_9, %c0_10] : memref<1x128xf32, #tpu.memory_space<vmem>>, vector<1x128xf32>
    %13 = vector.broadcast %12 : vector<1x128xf32> to vector<16x128xf32>
    %14 = arith.addf %11, %13 : vector<16x128xf32>
    %cst_11 = arith.constant 0.000000e+00 : f32
    %15 = vector.broadcast %cst_11 : f32 to vector<16x128xf32>
    %16 = arith.maximumf %14, %15 : vector<16x128xf32>
    %c0_12 = arith.constant 0 : index
    %c0_13 = arith.constant 0 : index
    %17 = vector.load %arg6[%c0_12, %c0_13] : memref<128x128xf32, #tpu.memory_space<vmem>>, vector<128x128xf32>
    %cst_14 = arith.constant dense<0.000000e+00> : vector<16x128xf32>
    %18 = tpu.matmul %16, %17, %cst_14 {dimension_numbers = #tpu.dot_dimension_numbers<[1], [0], [0], [1], [0, 0, 1, 1], [], []>} : vector<16x128xf32>, vector<128x128xf32>, vector<16x128xf32> -> vector<16x128xf32>
    %19 = arith.addf %18, %9 : vector<16x128xf32>
    %c0_15 = arith.constant 0 : index
    %c0_16 = arith.constant 0 : index
    %20 = vector.load %arg7[%c0_15, %c0_16] : memref<1x128xf32, #tpu.memory_space<vmem>>, vector<1x128xf32>
    %21 = vector.broadcast %20 : vector<1x128xf32> to vector<16x128xf32>
    %22 = arith.addf %19, %21 : vector<16x128xf32>
    %cst_17 = arith.constant 0.000000e+00 : f32
    %23 = vector.broadcast %cst_17 : f32 to vector<16x128xf32>
    %24 = arith.maximumf %22, %23 : vector<16x128xf32>
    %c0_18 = arith.constant 0 : index
    %c0_19 = arith.constant 0 : index
    %25 = vector.load %arg8[%c0_18, %c0_19] : memref<128x128xf32, #tpu.memory_space<vmem>>, vector<128x128xf32>
    %cst_20 = arith.constant dense<0.000000e+00> : vector<16x128xf32>
    %26 = tpu.matmul %24, %25, %cst_20 {dimension_numbers = #tpu.dot_dimension_numbers<[1], [0], [0], [1], [0, 0, 1, 1], [], []>} : vector<16x128xf32>, vector<128x128xf32>, vector<16x128xf32> -> vector<16x128xf32>
    %c0_21 = arith.constant 0 : index
    %c0_22 = arith.constant 0 : index
    %27 = vector.load %arg9[%c0_21, %c0_22] : memref<1x128xf32, #tpu.memory_space<vmem>>, vector<1x128xf32>
    %28 = vector.broadcast %27 : vector<1x128xf32> to vector<16x128xf32>
    %29 = arith.addf %26, %28 : vector<16x128xf32>
    %cst_23 = arith.constant 0.000000e+00 : f32
    %30 = vector.broadcast %cst_23 : f32 to vector<16x128xf32>
    %31 = arith.maximumf %29, %30 : vector<16x128xf32>
    %c0_24 = arith.constant 0 : index
    %c0_25 = arith.constant 0 : index
    %32 = vector.load %arg10[%c0_24, %c0_25] : memref<128x4xf32, #tpu.memory_space<vmem>>, vector<128x4xf32>
    %cst_26 = arith.constant dense<0.000000e+00> : vector<16x4xf32>
    %33 = tpu.matmul %31, %32, %cst_26 {dimension_numbers = #tpu.dot_dimension_numbers<[1], [0], [0], [1], [0, 0, 1, 1], [], []>} : vector<16x128xf32>, vector<128x4xf32>, vector<16x4xf32> -> vector<16x4xf32>
    %c0_27 = arith.constant 0 : index
    %c0_28 = arith.constant 0 : index
    %34 = vector.load %arg11[%c0_27, %c0_28] : memref<1x4xf32, #tpu.memory_space<vmem>>, vector<1x4xf32>
    %35 = vector.broadcast %34 : vector<1x4xf32> to vector<16x4xf32>
    %36 = arith.addf %33, %35 : vector<16x4xf32>
    %c0_29 = arith.constant 0 : index
    %c0_30 = arith.constant 0 : index
    %37 = vector.load %arg12[%c0_29, %c0_30] : memref<16x4xf32, #tpu.memory_space<vmem>>, vector<16x4xf32>
    tpu.vector_store %arg12[%c0_29, %c0_30], %36 {strides = array<i32>} : memref<16x4xf32, #tpu.memory_space<vmem>>, vector<16x4xf32>,
    return
  }
  func.func @transform_0(%arg0: i32) -> (i32, i32) {
    %c0_i32 = arith.constant 0 : i32
    %c0_i32_0 = arith.constant 0 : i32
    return %arg0, %c0_i32 : i32, i32
  }
  func.func @transform_1(%arg0: i32) -> (i32, i32) {
    %c0_i32 = arith.constant 0 : i32
    %c0_i32_0 = arith.constant 0 : i32
    %c0_i32_1 = arith.constant 0 : i32
    return %c0_i32, %c0_i32_0 : i32, i32
  }
  func.func @transform_2(%arg0: i32) -> (i32, i32) {
    %c0_i32 = arith.constant 0 : i32
    %c0_i32_0 = arith.constant 0 : i32
    %c0_i32_1 = arith.constant 0 : i32
    return %c0_i32, %c0_i32_0 : i32, i32
  }
  func.func @transform_3(%arg0: i32) -> (i32, i32) {
    %c0_i32 = arith.constant 0 : i32
    %c0_i32_0 = arith.constant 0 : i32
    %c0_i32_1 = arith.constant 0 : i32
    return %c0_i32, %c0_i32_0 : i32, i32
  }
  func.func @transform_4(%arg0: i32) -> (i32, i32) {
    %c0_i32 = arith.constant 0 : i32
    %c0_i32_0 = arith.constant 0 : i32
    %c0_i32_1 = arith.constant 0 : i32
    return %c0_i32, %c0_i32_0 : i32, i32
  }
  func.func @transform_5(%arg0: i32) -> (i32, i32) {
    %c0_i32 = arith.constant 0 : i32
    %c0_i32_0 = arith.constant 0 : i32
    %c0_i32_1 = arith.constant 0 : i32
    return %c0_i32, %c0_i32_0 : i32, i32
  }
  func.func @transform_6(%arg0: i32) -> (i32, i32) {
    %c0_i32 = arith.constant 0 : i32
    %c0_i32_0 = arith.constant 0 : i32
    %c0_i32_1 = arith.constant 0 : i32
    return %c0_i32, %c0_i32_0 : i32, i32
  }
  func.func @transform_7(%arg0: i32) -> (i32, i32) {
    %c0_i32 = arith.constant 0 : i32
    %c0_i32_0 = arith.constant 0 : i32
    %c0_i32_1 = arith.constant 0 : i32
    return %c0_i32, %c0_i32_0 : i32, i32
  }
  func.func @transform_8(%arg0: i32) -> (i32, i32) {
    %c0_i32 = arith.constant 0 : i32
    %c0_i32_0 = arith.constant 0 : i32
    %c0_i32_1 = arith.constant 0 : i32
    return %c0_i32, %c0_i32_0 : i32, i32
  }
  func.func @transform_9(%arg0: i32) -> (i32, i32) {
    %c0_i32 = arith.constant 0 : i32
    %c0_i32_0 = arith.constant 0 : i32
    %c0_i32_1 = arith.constant 0 : i32
    return %c0_i32, %c0_i32_0 : i32, i32
  }
  func.func @transform_10(%arg0: i32) -> (i32, i32) {
    %c0_i32 = arith.constant 0 : i32
    %c0_i32_0 = arith.constant 0 : i32
    %c0_i32_1 = arith.constant 0 : i32
    return %c0_i32, %c0_i32_0 : i32, i32
  }
  func.func @transform_11(%arg0: i32) -> (i32, i32) {
    %c0_i32 = arith.constant 0 : i32
    %c0_i32_0 = arith.constant 0 : i32
    return %arg0, %c0_i32 : i32, i32
  }
}

</mosaic_0001>

<llo_original>
// kernel: tpu_custom_call.1
$region0: #{tpu_custom_call.1}
  #allocation0 [shape = 'u32[]', space=smem, size = 0x4, offset = 0x4, fixed_abs, tag = 'smem constant byte address 0x4 - core index']
  #allocation1 [shape = 'u32[144,128]{1,0:T(1,128)}', space=vmem, size = 0x12000, scoped, tag = 'internal scratch']
  %s0 = inlined_call_operand.hbm [shape: f32[16,64], index: 0, kind: input, shape index: {}]
  %s1 = inlined_call_operand.vmem [shape: f32[64,256], index: 1, kind: input, shape index: {}]
  %s2 = inlined_call_operand.vmem [shape: f32[1,128], index: 2, kind: input, shape index: {}]
  %s3 = inlined_call_operand.hbm [shape: f32[128,128], index: 3, kind: input, shape index: {}]
  %s4 = inlined_call_operand.vmem [shape: f32[1,128], index: 4, kind: input, shape index: {}]
  %s5 = inlined_call_operand.hbm [shape: f32[128,128], index: 5, kind: input, shape index: {}]
  %s6 = inlined_call_operand.vmem [shape: f32[1,128], index: 6, kind: input, shape index: {}]
  %s7 = inlined_call_operand.hbm [shape: f32[128,128], index: 7, kind: input, shape index: {}]
  %s8 = inlined_call_operand.vmem [shape: f32[1,128], index: 8, kind: input, shape index: {}]
  %s9 = inlined_call_operand.vmem [shape: f32[128,4], index: 9, kind: input, shape index: {}]
  %s10 = inlined_call_operand.vmem [shape: f32[1,4], index: 10, kind: input, shape index: {}]
  %s11 = inlined_call_operand.vmem [shape: f32[16,4], index: 11, kind: output, shape index: {}]
  %s12 = sld [smem:[#allocation0]]
  $region70: #{tpu_custom_call.1} parent=0
    _
  %s14 = ssub.s32 1, %s12
  %s15 = scalar_select 0, %s14, %s12
  $region1: #{tpu_custom_call.1} parent=0
    #allocation2 [shape = 'u8[8192]{0}', space=vmem, size = 0x2000, scoped, tag = 'input window, operand 0, single buffered']
    #allocation3 [shape = 's32[1]{0}', space=sflag, size = 0x4, scoped, tag = 'scoped memory for tpu_custom_call.1']
    #allocation4 [shape = 'u8[65536]{0}', space=vmem, size = 0x10000, scoped, tag = 'input window, operand 3, single buffered']
    #allocation5 [shape = 's32[1]{0}', space=sflag, size = 0x4, scoped, tag = 'scoped memory for tpu_custom_call.1']
    #allocation6 [shape = 'u8[65536]{0}', space=vmem, size = 0x10000, scoped, tag = 'input window, operand 5, single buffered']
    #allocation7 [shape = 'u8[65536]{0}', space=vmem, size = 0x10000, scoped, tag = 'input window, operand 7, single buffered']
    #allocation8 [shape = 's32[1]{0}', space=sflag, size = 0x4, scoped, tag = 'scoped memory for tpu_custom_call.1']
    %16 = vsyncpa [#allocation3], 0
    %17 = vsyncpa [#allocation5], 0
    %18 = vsyncpa [#allocation8], 0
    // Predicated region
    $region2: #{tpu_custom_call.1} parent=1 // pred_check
      _
    $region3: #{tpu_custom_call.1} parent=1 // pred_check_branch
      %20 = sbr.rel (0) target = $region5
    $region4: #{tpu_custom_call.1} parent=1 // pred_region
      %s22 = ssub.s32 256, 256
      %23 = vsyncadd [#allocation3], %s22
      %s24 = sshll.u32 [#allocation2], 4
      %s25 = int_to_ptr.vmem [resolvable:$true] %s24
      %30 = dma.hbm_to_vmem [thread:$0]  %s0, 256, %s25, [#allocation3], 128, 128, 8
    $region5: #{tpu_custom_call.1} parent=1 // pred_fallthru
      _
    // Predicated region
    $region6: #{tpu_custom_call.1} parent=1 // pred_check
      _
    $region7: #{tpu_custom_call.1} parent=1 // pred_check_branch
      %32 = sbr.rel (0) target = $region9
    $region8: #{tpu_custom_call.1} parent=1 // pred_region
      _
    $region9: #{tpu_custom_call.1} parent=1 // pred_fallthru
      _
    // Predicated region
    $region10: #{tpu_custom_call.1} parent=1 // pred_check
      _
    $region11: #{tpu_custom_call.1} parent=1 // pred_check_branch
      %34 = sbr.rel (0) target = $region13
    $region12: #{tpu_custom_call.1} parent=1 // pred_region
      _
    $region13: #{tpu_custom_call.1} parent=1 // pred_fallthru
      _
    // Predicated region
    $region14: #{tpu_custom_call.1} parent=1 // pred_check
      _
    $region15: #{tpu_custom_call.1} parent=1 // pred_check_branch
      %36 = sbr.rel (0) target = $region17
    $region16: #{tpu_custom_call.1} parent=1 // pred_region
      %s38 = ssub.s32 2048, 2048
      %39 = vsyncadd [#allocation5], %s38
      %s40 = sshll.u32 [#allocation4], 4
      %s41 = int_to_ptr.vmem [resolvable:$true] %s40
      %46 = dma.hbm_to_vmem [thread:$0]  %s3, 2048, %s41, [#allocation5], 128, 128, 8
    $region17: #{tpu_custom_call.1} parent=1 // pred_fallthru
      _
    // Predicated region
    $region18: #{tpu_custom_call.1} parent=1 // pred_check
      _
    $region19: #{tpu_custom_call.1} parent=1 // pred_check_branch
      %48 = sbr.rel (0) target = $region21
    $region20: #{tpu_custom_call.1} parent=1 // pred_region
      _
    $region21: #{tpu_custom_call.1} parent=1 // pred_fallthru
      _
    // Predicated region
    $region22: #{tpu_custom_call.1} parent=1 // pred_check
      _
    $region23: #{tpu_custom_call.1} parent=1 // pred_check_branch
      %50 = sbr.rel (0) target = $region25
    $region24: #{tpu_custom_call.1} parent=1 // pred_region
      %s52 = ssub.s32 2048, 2048
      %53 = vsyncadd [#allocation5], %s52
      %s54 = sshll.u32 [#allocation6], 4
      %s55 = int_to_ptr.vmem [resolvable:$true] %s54
      %60 = dma.hbm_to_vmem [thread:$0]  %s5, 2048, %s55, [#allocation5], 128, 128, 8
    $region25: #{tpu_custom_call.1} parent=1 // pred_fallthru
      _
    // Predicated region
    $region26: #{tpu_custom_call.1} parent=1 // pred_check
      _
    $region27: #{tpu_custom_call.1} parent=1 // pred_check_branch
      %62 = sbr.rel (0) target = $region29
    $region28: #{tpu_custom_call.1} parent=1 // pred_region
      _
    $region29: #{tpu_custom_call.1} parent=1 // pred_fallthru
      _
    // Predicated region
    $region30: #{tpu_custom_call.1} parent=1 // pred_check
      _
    $region31: #{tpu_custom_call.1} parent=1 // pred_check_branch
      %64 = sbr.rel (0) target = $region33
    $region32: #{tpu_custom_call.1} parent=1 // pred_region
      %s66 = ssub.s32 2048, 2048
      %67 = vsyncadd [#allocation8], %s66
      %s68 = sshll.u32 [#allocation7], 4
      %s69 = int_to_ptr.vmem [resolvable:$true] %s68
      %74 = dma.hbm_to_vmem [thread:$0]  %s7, 2048, %s69, [#allocation8], 128, 128, 8
    $region33: #{tpu_custom_call.1} parent=1 // pred_fallthru
      _
    // Predicated region
    $region34: #{tpu_custom_call.1} parent=1 // pred_check
      _
    $region35: #{tpu_custom_call.1} parent=1 // pred_check_branch
      %76 = sbr.rel (0) target = $region37
    $region36: #{tpu_custom_call.1} parent=1 // pred_region
      _
    $region37: #{tpu_custom_call.1} parent=1 // pred_fallthru
      _
    // Predicated region
    $region38: #{tpu_custom_call.1} parent=1 // pred_check
      _
    $region39: #{tpu_custom_call.1} parent=1 // pred_check_branch
      %78 = sbr.rel (0) target = $region41
    $region40: #{tpu_custom_call.1} parent=1 // pred_region
      _
    $region41: #{tpu_custom_call.1} parent=1 // pred_fallthru
      _
    // Predicated region
    $region42: #{tpu_custom_call.1} parent=1 // pred_check
      _
    $region43: #{tpu_custom_call.1} parent=1 // pred_check_branch
      %80 = sbr.rel (0) target = $region45
    $region44: #{tpu_custom_call.1} parent=1 // pred_region
      _
    $region45: #{tpu_custom_call.1} parent=1 // pred_fallthru
      _
    // Predicated region
    $region46: #{tpu_custom_call.1} parent=1 // pred_check
      _
    $region47: #{tpu_custom_call.1} parent=1 // pred_check_branch
      %82 = sbr.rel (0) target = $region49
    $region48: #{tpu_custom_call.1} parent=1 // pred_region
      %83 = dma.done [#allocation3], 256
    $region49: #{tpu_custom_call.1} parent=1 // pred_fallthru
      _
    // Predicated region
    $region50: #{tpu_custom_call.1} parent=1 // pred_check
      _
    $region51: #{tpu_custom_call.1} parent=1 // pred_check_branch
      %85 = sbr.rel (0) target = $region53
    $region52: #{tpu_custom_call.1} parent=1 // pred_region
      %86 = dma.done [#allocation5], 2048
    $region53: #{tpu_custom_call.1} parent=1 // pred_fallthru
      _
    // Predicated region
    $region54: #{tpu_custom_call.1} parent=1 // pred_check
      _
    $region55: #{tpu_custom_call.1} parent=1 // pred_check_branch
      %88 = sbr.rel (0) target = $region57
    $region56: #{tpu_custom_call.1} parent=1 // pred_region
      %89 = dma.done [#allocation5], 2048
    $region57: #{tpu_custom_call.1} parent=1 // pred_fallthru
      _
    // Predicated region
    $region58: #{tpu_custom_call.1} parent=1 // pred_check
      _
    $region59: #{tpu_custom_call.1} parent=1 // pred_check_branch
      %91 = sbr.rel (0) target = $region61
    $region60: #{tpu_custom_call.1} parent=1 // pred_region
      %92 = dma.done [#allocation8], 2048
    $region61: #{tpu_custom_call.1} parent=1 // pred_fallthru
      _
    %v93 = vld [vmem:[#allocation2] sm:$0xff]
    %v94 = vld [vmem:[#allocation2 + $0x8] sm:$0xff]
    %v95 = vld [vmem:[%s1] sm:$0xff]
    %v96 = vld [vmem:[%s1 + $0x8] sm:$0xff]
    %v97 = vld [vmem:[%s1 + $0x10] sm:$0xff]
    %v98 = vld [vmem:[%s1 + $0x18] sm:$0xff]
    %v99 = vld [vmem:[%s1 + $0x20] sm:$0xff]
    %v100 = vld [vmem:[%s1 + $0x28] sm:$0xff]
    %v101 = vld [vmem:[%s1 + $0x30] sm:$0xff]
    %v102 = vld [vmem:[%s1 + $0x38] sm:$0xff]
    %v103 = vld [vmem:[%s1 + $0x40] sm:$0xff]
    %v104 = vld [vmem:[%s1 + $0x48] sm:$0xff]
    %v105 = vld [vmem:[%s1 + $0x50] sm:$0xff]
    %v106 = vld [vmem:[%s1 + $0x58] sm:$0xff]
    %v107 = vld [vmem:[%s1 + $0x60] sm:$0xff]
    %v108 = vld [vmem:[%s1 + $0x68] sm:$0xff]
    %v109 = vld [vmem:[%s1 + $0x70] sm:$0xff]
    %v110 = vld [vmem:[%s1 + $0x78] sm:$0xff]
    %vm111 = vcmask 523264
    %v113 = vsel %vm111, %v93, 0
    %v116 = vsel %vm111, %v94, 0
    %118 = vmatprep.subr.mxu0 0.0
    %119 = vmatpush1.msra.mxu0 0.0
    %120 = vmatprep.subr.mxu0 0.0
    %121 = vmatpush1.msra.mxu0 0.0
    %122 = vmatprep.subr.mxu0 0.0
    %123 = vmatpush1.msra.mxu0 0.0
    %124 = vmatprep.subr.mxu0 0.0
    %125 = vmatpush1.msra.mxu0 0.0
    %126 = vmatprep.subr.mxu0 0.0
    %127 = vmatpush1.msra.mxu0 0.0
    %128 = vmatprep.subr.mxu0 0.0
    %129 = vmatpush1.msra.mxu0 0.0
    %130 = vmatprep.subr.mxu0 0.0
    %131 = vmatpush1.msra.mxu0 0.0
    %132 = vmatprep.subr.mxu0 0.0
    %133 = vmatpush1.msra.mxu0 0.0
    %134 = vmatprep.subr.mxu0 %v110
    %135 = vmatpush1.msra.mxu0 %v109
    %136 = vmatprep.subr.mxu0 %v108
    %137 = vmatpush1.msra.mxu0 %v107
    %138 = vmatprep.subr.mxu0 %v106
    %139 = vmatpush1.msra.mxu0 %v105
    %140 = vmatprep.subr.mxu0 %v104
    %141 = vmatpush1.msra.mxu0 %v103
    %142 = vmatprep.subr.mxu0 %v102
    %143 = vmatpush1.msra.mxu0 %v101
    %144 = vmatprep.subr.mxu0 %v100
    %145 = vmatpush1.msra.mxu0 %v99
    %146 = vmatprep.subr.mxu0 %v98
    %147 = vmatpush1.msra.mxu0 %v97
    %148 = vmatprep.subr.mxu0 %v96
    %149 = vmatpush1.msra.mxu0 %v95
    %150 = vmatprep.subr.mxu0 0.0
    %151 = vmatpush2.msra.mxu0 0.0
    %152 = vmatprep.subr.mxu0 0.0
    %153 = vmatpush2.msra.mxu0 0.0
    %154 = vmatprep.subr.mxu0 0.0
    %155 = vmatpush2.msra.mxu0 0.0
    %156 = vmatprep.subr.mxu0 0.0
    %157 = vmatpush2.msra.mxu0 0.0
    %158 = vmatprep.subr.mxu0 0.0
    %159 = vmatpush2.msra.mxu0 0.0
    %160 = vmatprep.subr.mxu0 0.0
    %161 = vmatpush2.msra.mxu0 0.0
    %162 = vmatprep.subr.mxu0 0.0
    %163 = vmatpush2.msra.mxu0 0.0
    %164 = vmatprep.subr.mxu0 0.0
    %165 = vmatpush2.msra.mxu0 0.0
    %166 = vmatprep.subr.mxu0 0.0
    %167 = vmatpush2.msra.mxu0 0.0
    %168 = vmatprep.subr.mxu0 0.0
    %169 = vmatpush2.msra.mxu0 0.0
    %170 = vmatprep.subr.mxu0 0.0
    %171 = vmatpush2.msra.mxu0 0.0
    %172 = vmatprep.subr.mxu0 0.0
    %173 = vmatpush2.msra.mxu0 0.0
    %174 = vmatprep.subr.mxu0 0.0
    %175 = vmatpush2.msra.mxu0 0.0
    %176 = vmatprep.subr.mxu0 0.0
    %177 = vmatpush2.msra.mxu0 0.0
    %178 = vmatprep.subr.mxu0 0.0
    %179 = vmatpush2.msra.mxu0 0.0
    %180 = vmatprep.subr.mxu0 0.0
    %181 = vmatpush2.msra.mxu0 0.0
    %182 = vmatprep.mubr.f32.mxu0 0.0
    %183 = vmatmul.mubr.f32.gmra.mxu0 %v113
    %v184 = vpop.f32.mrf.mxu0
    %v185 = vadd.f32 0.0, %v184
    %v186 = vpop.f32.mrf.mxu0
    %v187 = vadd.f32 0.0, %v186
    %188 = vmatprep.mubr.f32.mxu0 0.0
    %189 = vmatmul.mubr.f32.gmra.mxu0 %v116
    %v190 = vpop.f32.mrf.mxu0
    %v191 = vadd.f32 0.0, %v190
    %v192 = vpop.f32.mrf.mxu0
    %v193 = vadd.f32 0.0, %v192
    %194 = vdwg.mxu0
    %v195 = vld [vmem:[%s2] sm:$0x1]
    %v197 = vlaneseq
    %v198 = vshrl.u32 %v197, 7
    %v199 = vsub.s32 0, %v198
    %v200 = vrot.slane %v195, %v199
    %v202 = vadd.f32 %v185, %v200
    %v203 = vadd.f32 %v191, %v200
    %v204 = vmax.f32 %v202, 0.0
    %v205 = vmax.f32 %v203, 0.0
    %v206 = vld [vmem:[#allocation4] sm:$0xff]
    %v207 = vld [vmem:[#allocation4 + $0x8] sm:$0xff]
    %v208 = vld [vmem:[#allocation4 + $0x10] sm:$0xff]
    %v209 = vld [vmem:[#allocation4 + $0x18] sm:$0xff]
    %v210 = vld [vmem:[#allocation4 + $0x20] sm:$0xff]
    %v211 = vld [vmem:[#allocation4 + $0x28] sm:$0xff]
    %v212 = vld [vmem:[#allocation4 + $0x30] sm:$0xff]
    %v213 = vld [vmem:[#allocation4 + $0x38] sm:$0xff]
    %v214 = vld [vmem:[#allocation4 + $0x40] sm:$0xff]
    %v215 = vld [vmem:[#allocation4 + $0x48] sm:$0xff]
    %v216 = vld [vmem:[#allocation4 + $0x50] sm:$0xff]
    %v217 = vld [vmem:[#allocation4 + $0x58] sm:$0xff]
    %v218 = vld [vmem:[#allocation4 + $0x60] sm:$0xff]
    %v219 = vld [vmem:[#allocation4 + $0x68] sm:$0xff]
    %v220 = vld [vmem:[#allocation4 + $0x70] sm:$0xff]
    %v221 = vld [vmem:[#allocation4 + $0x78] sm:$0xff]
    %v222 = vld [vmem:[%s4] sm:$0x1]
    %v224 = vlaneseq
    %v225 = vshrl.u32 %v224, 7
    %v226 = vsub.s32 0, %v225
    %v227 = vrot.slane %v222, %v226
    %229 = vmatprep.subr.mxu0 0.0
    %230 = vmatpush1.msra.mxu0 %v221
    %231 = vmatprep.subr.mxu0 0.0
    %232 = vmatpush1.msra.mxu0 %v220
    %233 = vmatprep.subr.mxu0 0.0
    %234 = vmatpush1.msra.mxu0 %v219
    %235 = vmatprep.subr.mxu0 0.0
    %236 = vmatpush1.msra.mxu0 %v218
    %237 = vmatprep.subr.mxu0 0.0
    %238 = vmatpush1.msra.mxu0 %v217
    %239 = vmatprep.subr.mxu0 0.0
    %240 = vmatpush1.msra.mxu0 %v216
    %241 = vmatprep.subr.mxu0 0.0
    %242 = vmatpush1.msra.mxu0 %v215
    %243 = vmatprep.subr.mxu0 0.0
    %244 = vmatpush1.msra.mxu0 %v214
    %245 = vmatprep.subr.mxu0 0.0
    %246 = vmatpush1.msra.mxu0 %v213
    %247 = vmatprep.subr.mxu0 0.0
    %248 = vmatpush1.msra.mxu0 %v212
    %249 = vmatprep.subr.mxu0 0.0
    %250 = vmatpush1.msra.mxu0 %v211
    %251 = vmatprep.subr.mxu0 0.0
    %252 = vmatpush1.msra.mxu0 %v210
    %253 = vmatprep.subr.mxu0 0.0
    %254 = vmatpush1.msra.mxu0 %v209
    %255 = vmatprep.subr.mxu0 0.0
    %256 = vmatpush1.msra.mxu0 %v208
    %257 = vmatprep.subr.mxu0 0.0
    %258 = vmatpush1.msra.mxu0 %v207
    %259 = vmatprep.subr.mxu0 0.0
    %260 = vmatpush1.msra.mxu0 %v206
    %261 = vmatprep.subr.mxu0 0.0
    %262 = vmatpush2.msra.mxu0 0.0
    %263 = vmatprep.subr.mxu0 0.0
    %264 = vmatpush2.msra.mxu0 0.0
    %265 = vmatprep.subr.mxu0 0.0
    %266 = vmatpush2.msra.mxu0 0.0
    %267 = vmatprep.subr.mxu0 0.0
    %268 = vmatpush2.msra.mxu0 0.0
    %269 = vmatprep.subr.mxu0 0.0
    %270 = vmatpush2.msra.mxu0 0.0
    %271 = vmatprep.subr.mxu0 0.0
    %272 = vmatpush2.msra.mxu0 0.0
    %273 = vmatprep.subr.mxu0 0.0
    %274 = vmatpush2.msra.mxu0 0.0
    %275 = vmatprep.subr.mxu0 0.0
    %276 = vmatpush2.msra.mxu0 0.0
    %277 = vmatprep.subr.mxu0 0.0
    %278 = vmatpush2.msra.mxu0 0.0
    %279 = vmatprep.subr.mxu0 0.0
    %280 = vmatpush2.msra.mxu0 0.0
    %281 = vmatprep.subr.mxu0 0.0
    %282 = vmatpush2.msra.mxu0 0.0
    %283 = vmatprep.subr.mxu0 0.0
    %284 = vmatpush2.msra.mxu0 0.0
    %285 = vmatprep.subr.mxu0 0.0
    %286 = vmatpush2.msra.mxu0 0.0
    %287 = vmatprep.subr.mxu0 0.0
    %288 = vmatpush2.msra.mxu0 0.0
    %289 = vmatprep.subr.mxu0 0.0
    %290 = vmatpush2.msra.mxu0 0.0
    %291 = vmatprep.subr.mxu0 0.0
    %292 = vmatpush2.msra.mxu0 0.0
    %293 = vmatprep.mubr.f32.mxu0 0.0
    %294 = vmatmul.mubr.f32.gmra.mxu0 %v204
    %v295 = vpop.f32.mrf.mxu0
    %v296 = vadd.f32 %v227, %v295
    %v297 = vpop.f32.mrf.mxu0
    %298 = vmatprep.mubr.f32.mxu0 0.0
    %299 = vmatmul.mubr.f32.gmra.mxu0 %v205
    %v300 = vpop.f32.mrf.mxu0
    %v301 = vadd.f32 %v227, %v300
    %v302 = vpop.f32.mrf.mxu0
    %303 = vdwg.mxu0
    %v304 = vmax.f32 %v296, 0.0
    %v305 = vmax.f32 %v301, 0.0
    %v306 = vld [vmem:[#allocation6] sm:$0xff]
    %v307 = vld [vmem:[#allocation6 + $0x8] sm:$0xff]
    %v308 = vld [vmem:[#allocation6 + $0x10] sm:$0xff]
    %v309 = vld [vmem:[#allocation6 + $0x18] sm:$0xff]
    %v310 = vld [vmem:[#allocation6 + $0x20] sm:$0xff]
    %v311 = vld [vmem:[#allocation6 + $0x28] sm:$0xff]
    %v312 = vld [vmem:[#allocation6 + $0x30] sm:$0xff]
    %v313 = vld [vmem:[#allocation6 + $0x38] sm:$0xff]
    %v314 = vld [vmem:[#allocation6 + $0x40] sm:$0xff]
    %v315 = vld [vmem:[#allocation6 + $0x48] sm:$0xff]
    %v316 = vld [vmem:[#allocation6 + $0x50] sm:$0xff]
    %v317 = vld [vmem:[#allocation6 + $0x58] sm:$0xff]
    %v318 = vld [vmem:[#allocation6 + $0x60] sm:$0xff]
    %v319 = vld [vmem:[#allocation6 + $0x68] sm:$0xff]
    %v320 = vld [vmem:[#allocation6 + $0x70] sm:$0xff]
    %v321 = vld [vmem:[#allocation6 + $0x78] sm:$0xff]
    %322 = vmatprep.subr.mxu0 0.0
    %323 = vmatpush1.msra.mxu0 %v321
    %324 = vmatprep.subr.mxu0 0.0
    %325 = vmatpush1.msra.mxu0 %v320
    %326 = vmatprep.subr.mxu0 0.0
    %327 = vmatpush1.msra.mxu0 %v319
    %328 = vmatprep.subr.mxu0 0.0
    %329 = vmatpush1.msra.mxu0 %v318
    %330 = vmatprep.subr.mxu0 0.0
    %331 = vmatpush1.msra.mxu0 %v317
    %332 = vmatprep.subr.mxu0 0.0
    %333 = vmatpush1.msra.mxu0 %v316
    %334 = vmatprep.subr.mxu0 0.0
    %335 = vmatpush1.msra.mxu0 %v315
    %336 = vmatprep.subr.mxu0 0.0
    %337 = vmatpush1.msra.mxu0 %v314
    %338 = vmatprep.subr.mxu0 0.0
    %339 = vmatpush1.msra.mxu0 %v313
    %340 = vmatprep.subr.mxu0 0.0
    %341 = vmatpush1.msra.mxu0 %v312
    %342 = vmatprep.subr.mxu0 0.0
    %343 = vmatpush1.msra.mxu0 %v311
    %344 = vmatprep.subr.mxu0 0.0
    %345 = vmatpush1.msra.mxu0 %v310
    %346 = vmatprep.subr.mxu0 0.0
    %347 = vmatpush1.msra.mxu0 %v309
    %348 = vmatprep.subr.mxu0 0.0
    %349 = vmatpush1.msra.mxu0 %v308
    %350 = vmatprep.subr.mxu0 0.0
    %351 = vmatpush1.msra.mxu0 %v307
    %352 = vmatprep.subr.mxu0 0.0
    %353 = vmatpush1.msra.mxu0 %v306
    %354 = vmatprep.subr.mxu0 0.0
    %355 = vmatpush2.msra.mxu0 0.0
    %356 = vmatprep.subr.mxu0 0.0
    %357 = vmatpush2.msra.mxu0 0.0
    %358 = vmatprep.subr.mxu0 0.0
    %359 = vmatpush2.msra.mxu0 0.0
    %360 = vmatprep.subr.mxu0 0.0
    %361 = vmatpush2.msra.mxu0 0.0
    %362 = vmatprep.subr.mxu0 0.0
    %363 = vmatpush2.msra.mxu0 0.0
    %364 = vmatprep.subr.mxu0 0.0
    %365 = vmatpush2.msra.mxu0 0.0
    %366 = vmatprep.subr.mxu0 0.0
    %367 = vmatpush2.msra.mxu0 0.0
    %368 = vmatprep.subr.mxu0 0.0
    %369 = vmatpush2.msra.mxu0 0.0
    %370 = vmatprep.subr.mxu0 0.0
    %371 = vmatpush2.msra.mxu0 0.0
    %372 = vmatprep.subr.mxu0 0.0
    %373 = vmatpush2.msra.mxu0 0.0
    %374 = vmatprep.subr.mxu0 0.0
    %375 = vmatpush2.msra.mxu0 0.0
    %376 = vmatprep.subr.mxu0 0.0
    %377 = vmatpush2.msra.mxu0 0.0
    %378 = vmatprep.subr.mxu0 0.0
    %379 = vmatpush2.msra.mxu0 0.0
    %380 = vmatprep.subr.mxu0 0.0
    %381 = vmatpush2.msra.mxu0 0.0
    %382 = vmatprep.subr.mxu0 0.0
    %383 = vmatpush2.msra.mxu0 0.0
    %384 = vmatprep.subr.mxu0 0.0
    %385 = vmatpush2.msra.mxu0 0.0
    %386 = vmatprep.mubr.f32.mxu0 0.0
    %387 = vmatmul.mubr.f32.gmra.mxu0 %v304
    %v388 = vpop.f32.mrf.mxu0
    %v389 = vadd.f32 %v187, %v388
    %v390 = vpop.f32.mrf.mxu0
    %391 = vmatprep.mubr.f32.mxu0 0.0
    %392 = vmatmul.mubr.f32.gmra.mxu0 %v305
    %v393 = vpop.f32.mrf.mxu0
    %v394 = vadd.f32 %v193, %v393
    %v395 = vpop.f32.mrf.mxu0
    %396 = vdwg.mxu0
    %v397 = vld [vmem:[%s6] sm:$0x1]
    %v399 = vlaneseq
    %v400 = vshrl.u32 %v399, 7
    %v401 = vsub.s32 0, %v400
    %v402 = vrot.slane %v397, %v401
    %v404 = vadd.f32 %v389, %v402
    %v405 = vadd.f32 %v394, %v402
    %v406 = vmax.f32 %v404, 0.0
    %v407 = vmax.f32 %v405, 0.0
    %v408 = vld [vmem:[#allocation7] sm:$0xff]
    %v409 = vld [vmem:[#allocation7 + $0x8] sm:$0xff]
    %v410 = vld [vmem:[#allocation7 + $0x10] sm:$0xff]
    %v411 = vld [vmem:[#allocation7 + $0x18] sm:$0xff]
    %v412 = vld [vmem:[#allocation7 + $0x20] sm:$0xff]
    %v413 = vld [vmem:[#allocation7 + $0x28] sm:$0xff]
    %v414 = vld [vmem:[#allocation7 + $0x30] sm:$0xff]
    %v415 = vld [vmem:[#allocation7 + $0x38] sm:$0xff]
    %v416 = vld [vmem:[#allocation7 + $0x40] sm:$0xff]
    %v417 = vld [vmem:[#allocation7 + $0x48] sm:$0xff]
    %v418 = vld [vmem:[#allocation7 + $0x50] sm:$0xff]
    %v419 = vld [vmem:[#allocation7 + $0x58] sm:$0xff]
    %v420 = vld [vmem:[#allocation7 + $0x60] sm:$0xff]
    %v421 = vld [vmem:[#allocation7 + $0x68] sm:$0xff]
    %v422 = vld [vmem:[#allocation7 + $0x70] sm:$0xff]
    %v423 = vld [vmem:[#allocation7 + $0x78] sm:$0xff]
    %v424 = vld [vmem:[%s8] sm:$0x1]
    %v426 = vlaneseq
    %v427 = vshrl.u32 %v426, 7
    %v428 = vsub.s32 0, %v427
    %v429 = vrot.slane %v424, %v428
    %431 = vmatprep.subr.mxu0 0.0
    %432 = vmatpush1.msra.mxu0 %v423
    %433 = vmatprep.subr.mxu0 0.0
    %434 = vmatpush1.msra.mxu0 %v422
    %435 = vmatprep.subr.mxu0 0.0
    %436 = vmatpush1.msra.mxu0 %v421
    %437 = vmatprep.subr.mxu0 0.0
    %438 = vmatpush1.msra.mxu0 %v420
    %439 = vmatprep.subr.mxu0 0.0
    %440 = vmatpush1.msra.mxu0 %v419
    %441 = vmatprep.subr.mxu0 0.0
    %442 = vmatpush1.msra.mxu0 %v418
    %443 = vmatprep.subr.mxu0 0.0
    %444 = vmatpush1.msra.mxu0 %v417
    %445 = vmatprep.subr.mxu0 0.0
    %446 = vmatpush1.msra.mxu0 %v416
    %447 = vmatprep.subr.mxu0 0.0
    %448 = vmatpush1.msra.mxu0 %v415
    %449 = vmatprep.subr.mxu0 0.0
    %450 = vmatpush1.msra.mxu0 %v414
    %451 = vmatprep.subr.mxu0 0.0
    %452 = vmatpush1.msra.mxu0 %v413
    %453 = vmatprep.subr.mxu0 0.0
    %454 = vmatpush1.msra.mxu0 %v412
    %455 = vmatprep.subr.mxu0 0.0
    %456 = vmatpush1.msra.mxu0 %v411
    %457 = vmatprep.subr.mxu0 0.0
    %458 = vmatpush1.msra.mxu0 %v410
    %459 = vmatprep.subr.mxu0 0.0
    %460 = vmatpush1.msra.mxu0 %v409
    %461 = vmatprep.subr.mxu0 0.0
    %462 = vmatpush1.msra.mxu0 %v408
    %463 = vmatprep.subr.mxu0 0.0
    %464 = vmatpush2.msra.mxu0 0.0
    %465 = vmatprep.subr.mxu0 0.0
    %466 = vmatpush2.msra.mxu0 0.0
    %467 = vmatprep.subr.mxu0 0.0
    %468 = vmatpush2.msra.mxu0 0.0
    %469 = vmatprep.subr.mxu0 0.0
    %470 = vmatpush2.msra.mxu0 0.0
    %471 = vmatprep.subr.mxu0 0.0
    %472 = vmatpush2.msra.mxu0 0.0
    %473 = vmatprep.subr.mxu0 0.0
    %474 = vmatpush2.msra.mxu0 0.0
    %475 = vmatprep.subr.mxu0 0.0
    %476 = vmatpush2.msra.mxu0 0.0
    %477 = vmatprep.subr.mxu0 0.0
    %478 = vmatpush2.msra.mxu0 0.0
    %479 = vmatprep.subr.mxu0 0.0
    %480 = vmatpush2.msra.mxu0 0.0
    %481 = vmatprep.subr.mxu0 0.0
    %482 = vmatpush2.msra.mxu0 0.0
    %483 = vmatprep.subr.mxu0 0.0
    %484 = vmatpush2.msra.mxu0 0.0
    %485 = vmatprep.subr.mxu0 0.0
    %486 = vmatpush2.msra.mxu0 0.0
    %487 = vmatprep.subr.mxu0 0.0
    %488 = vmatpush2.msra.mxu0 0.0
    %489 = vmatprep.subr.mxu0 0.0
    %490 = vmatpush2.msra.mxu0 0.0
    %491 = vmatprep.subr.mxu0 0.0
    %492 = vmatpush2.msra.mxu0 0.0
    %493 = vmatprep.subr.mxu0 0.0
    %494 = vmatpush2.msra.mxu0 0.0
    %495 = vmatprep.mubr.f32.mxu0 0.0
    %496 = vmatmul.mubr.f32.gmra.mxu0 %v406
    %v497 = vpop.f32.mrf.mxu0
    %v498 = vadd.f32 %v429, %v497
    %v499 = vpop.f32.mrf.mxu0
    %500 = vmatprep.mubr.f32.mxu0 0.0
    %501 = vmatmul.mubr.f32.gmra.mxu0 %v407
    %v502 = vpop.f32.mrf.mxu0
    %v503 = vadd.f32 %v429, %v502
    %v504 = vpop.f32.mrf.mxu0
    %505 = vdwg.mxu0
    %v506 = vmax.f32 %v498, 0.0
    %v507 = vmax.f32 %v503, 0.0
    %v508 = vld [vmem:[%s9] sm:$0xff]
    %v509 = vld [vmem:[%s9 + $0x8] sm:$0xff]
    %v510 = vld [vmem:[%s9 + $0x10] sm:$0xff]
    %v511 = vld [vmem:[%s9 + $0x18] sm:$0xff]
    %v512 = vld [vmem:[%s9 + $0x20] sm:$0xff]
    %v513 = vld [vmem:[%s9 + $0x28] sm:$0xff]
    %v514 = vld [vmem:[%s9 + $0x30] sm:$0xff]
    %v515 = vld [vmem:[%s9 + $0x38] sm:$0xff]
    %v516 = vld [vmem:[%s9 + $0x40] sm:$0xff]
    %v517 = vld [vmem:[%s9 + $0x48] sm:$0xff]
    %v518 = vld [vmem:[%s9 + $0x50] sm:$0xff]
    %v519 = vld [vmem:[%s9 + $0x58] sm:$0xff]
    %v520 = vld [vmem:[%s9 + $0x60] sm:$0xff]
    %v521 = vld [vmem:[%s9 + $0x68] sm:$0xff]
    %v522 = vld [vmem:[%s9 + $0x70] sm:$0xff]
    %v523 = vld [vmem:[%s9 + $0x78] sm:$0xff]
    %v524 = vld [vmem:[%s10] sm:$0x1]
    %v526 = vlaneseq
    %v527 = vshrl.u32 %v526, 7
    %v528 = vsub.s32 0, %v527
    %v529 = vrot.slane %v524, %v528
    %531 = vmatprep.subr.mxu0 0.0
    %532 = vmatpush1.msra.mxu0 %v523
    %533 = vmatprep.subr.mxu0 0.0
    %534 = vmatpush1.msra.mxu0 %v522
    %535 = vmatprep.subr.mxu0 0.0
    %536 = vmatpush1.msra.mxu0 %v521
    %537 = vmatprep.subr.mxu0 0.0
    %538 = vmatpush1.msra.mxu0 %v520
    %539 = vmatprep.subr.mxu0 0.0
    %540 = vmatpush1.msra.mxu0 %v519
    %541 = vmatprep.subr.mxu0 0.0
    %542 = vmatpush1.msra.mxu0 %v518
    %543 = vmatprep.subr.mxu0 0.0
    %544 = vmatpush1.msra.mxu0 %v517
    %545 = vmatprep.subr.mxu0 0.0
    %546 = vmatpush1.msra.mxu0 %v516
    %547 = vmatprep.subr.mxu0 0.0
    %548 = vmatpush1.msra.mxu0 %v515
    %549 = vmatprep.subr.mxu0 0.0
    %550 = vmatpush1.msra.mxu0 %v514
    %551 = vmatprep.subr.mxu0 0.0
    %552 = vmatpush1.msra.mxu0 %v513
    %553 = vmatprep.subr.mxu0 0.0
    %554 = vmatpush1.msra.mxu0 %v512
    %555 = vmatprep.subr.mxu0 0.0
    %556 = vmatpush1.msra.mxu0 %v511
    %557 = vmatprep.subr.mxu0 0.0
    %558 = vmatpush1.msra.mxu0 %v510
    %559 = vmatprep.subr.mxu0 0.0
    %560 = vmatpush1.msra.mxu0 %v509
    %561 = vmatprep.subr.mxu0 0.0
    %562 = vmatpush1.msra.mxu0 %v508
    %563 = vmatprep.subr.mxu0 0.0
    %564 = vmatpush2.msra.mxu0 0.0
    %565 = vmatprep.subr.mxu0 0.0
    %566 = vmatpush2.msra.mxu0 0.0
    %567 = vmatprep.subr.mxu0 0.0
    %568 = vmatpush2.msra.mxu0 0.0
    %569 = vmatprep.subr.mxu0 0.0
    %570 = vmatpush2.msra.mxu0 0.0
    %571 = vmatprep.subr.mxu0 0.0
    %572 = vmatpush2.msra.mxu0 0.0
    %573 = vmatprep.subr.mxu0 0.0
    %574 = vmatpush2.msra.mxu0 0.0
    %575 = vmatprep.subr.mxu0 0.0
    %576 = vmatpush2.msra.mxu0 0.0
    %577 = vmatprep.subr.mxu0 0.0
    %578 = vmatpush2.msra.mxu0 0.0
    %579 = vmatprep.subr.mxu0 0.0
    %580 = vmatpush2.msra.mxu0 0.0
    %581 = vmatprep.subr.mxu0 0.0
    %582 = vmatpush2.msra.mxu0 0.0
    %583 = vmatprep.subr.mxu0 0.0
    %584 = vmatpush2.msra.mxu0 0.0
    %585 = vmatprep.subr.mxu0 0.0
    %586 = vmatpush2.msra.mxu0 0.0
    %587 = vmatprep.subr.mxu0 0.0
    %588 = vmatpush2.msra.mxu0 0.0
    %589 = vmatprep.subr.mxu0 0.0
    %590 = vmatpush2.msra.mxu0 0.0
    %591 = vmatprep.subr.mxu0 0.0
    %592 = vmatpush2.msra.mxu0 0.0
    %593 = vmatprep.subr.mxu0 0.0
    %594 = vmatpush2.msra.mxu0 0.0
    %595 = vmatprep.mubr.f32.mxu0 0.0
    %596 = vmatmul.mubr.f32.gmra.mxu0 %v506
    %v597 = vpop.f32.mrf.mxu0
    %v598 = vadd.f32 %v529, %v597
    %v599 = vpop.f32.mrf.mxu0
    %600 = vmatprep.mubr.f32.mxu0 0.0
    %601 = vmatmul.mubr.f32.gmra.mxu0 %v507
    %v602 = vpop.f32.mrf.mxu0
    %v603 = vadd.f32 %v529, %v602
    %v604 = vpop.f32.mrf.mxu0
    %605 = vdwg.mxu0
    %vm606 = vcmask 31744
    %607 = vst.msk [vmem:[%s11] sm:$0xff] %vm606, %v598
    %608 = vst.msk [vmem:[%s11 + $0x8] sm:$0xff] %vm606, %v603
    // Predicated region
    $region62: #{tpu_custom_call.1} parent=1 // pred_check
      _
    $region63: #{tpu_custom_call.1} parent=1 // pred_check_branch
      %610 = sbr.rel (0) target = $region65
    $region64: #{tpu_custom_call.1} parent=1 // pred_region
      _
    $region65: #{tpu_custom_call.1} parent=1 // pred_fallthru
      _
    // Predicated region
    $region66: #{tpu_custom_call.1} parent=1 // pred_check
      _
    $region67: #{tpu_custom_call.1} parent=1 // pred_check_branch
      %612 = sbr.rel (0) target = $region69
    $region68: #{tpu_custom_call.1} parent=1 // pred_region
      _
    $region69: #{tpu_custom_call.1} parent=1 // pred_fallthru
      _
    %613 = vsyncpa [#allocation3], 1
    %614 = vsyncpa [#allocation5], 1
    %615 = vsyncpa [#allocation8], 1

</llo_original>
